<compile_context>
chip_gen: v5e
topology: v5e:2x2
jax: 0.10.0
libtpu: 0.0.40
codegen_flags: <defaults>
</compile_context>

<pallas_src>
import functools

import jax
import jax.numpy as jnp
from jax.experimental import pallas as pl
from jax.experimental.pallas import tpu as pltpu


# --------------------------------------------------------------------------
# Kernels
# --------------------------------------------------------------------------
def _cin_resident_kernel(x_ref, g_ref, b_ref, o_ref, *, eps, hw):
    """One grid step = one tile of (sample, channel) rows, full spatial extent.

    x_ref: (TR, HW)   g_ref/b_ref: (TR, 1) f32 (gamma / beta)   o_ref: (TR, HW)
    """
    x = x_ref[...].astype(jnp.float32)
    inv_n = jnp.float32(1.0 / hw)
    mean = jnp.sum(x, axis=-1, keepdims=True) * inv_n
    xc = x - mean
    var = jnp.sum(xc * xc, axis=-1, keepdims=True) * inv_n      # two-pass, biased
    a = g_ref[...] * jax.lax.rsqrt(var + eps)                   # (TR, 1)
    o_ref[...] = (xc * a + b_ref[...]).astype(o_ref.dtype)


def _cin_stats_kernel(x_ref, g_ref, b_ref, a_ref, c_ref, s1_ref, s2_ref,
                      *, eps, hw, thw):
    """Pass 1 of the spatially-tiled path: accumulate per-row sums over spatial
    tiles; on the last tile finalize a = gamma*rsqrt(var+eps), c = beta - a*mean."""
    h = pl.program_id(1)

    @pl.when(h == 0)
    def _():
        s1_ref[...] = jnp.zeros_like(s1_ref)
        s2_ref[...] = jnp.zeros_like(s2_ref)

    x = x_ref[...].astype(jnp.float32)                                # (TR, THW)
    col = h * thw + jax.lax.broadcasted_iota(jnp.int32, x.shape, 1)
    x = jnp.where(col < hw, x, 0.0)                                   # mask ragged tail
    s1_ref[...] += jnp.sum(x, axis=-1, keepdims=True)
    s2_ref[...] += jnp.sum(x * x, axis=-1, keepdims=True)

    @pl.when(h == pl.num_programs(1) - 1)
    def _():
        inv_n = jnp.float32(1.0 / hw)
        mean = s1_ref[...] * inv_n
        # Single-pass E[x^2]-mean^2 (f32 accumulation) to keep HBM reads at 1x
        # for the stats sweep; the resident path uses exact two-pass variance.
        var = jnp.maximum(s2_ref[...] * inv_n - mean * mean, 0.0)
        a = g_ref[...] * jax.lax.rsqrt(var + eps)
        a_ref[...] = a
        c_ref[...] = b_ref[...] - a * mean


def _cin_apply_kernel(x_ref, a_ref, c_ref, o_ref):
    """Pass 2 of the spatially-tiled path: out = a * x + c, elementwise."""
    o_ref[...] = (x_ref[...].astype(jnp.float32) * a_ref[...]
                  + c_ref[...]).astype(o_ref.dtype)


# --------------------------------------------------------------------------
# Tiling plans (chip-aware)
# --------------------------------------------------------------------------
def _usable_vmem(vmem_cap_bytes):
    if vmem_cap_bytes is None:
        try:
            vmem_cap_bytes = int(pltpu.get_tpu_info().vmem_capacity_bytes)
        except Exception:
            vmem_cap_bytes = 64 << 20          # conservative (v7x per-core VMEM)
    return max(int(0.75 * vmem_cap_bytes), 256 << 10)


def _plan_resident_rows(nc, hw, itemsize, usable):
    """Largest sublane-packed row tile whose resident (full-HW) blocks fit VMEM.
    Returns None if even one packed tile does not fit -> spatially-tiled path."""
    pack = 8 * max(1, 4 // itemsize)           # 8 f32 / 16 bf16 / 32 i8 rows
    per_buf = max(usable // 8, 1)              # budget per (double-buffered) I/O buffer
    row_io = hw * itemsize
    row_need = 4 * row_io + 2 * hw * 4         # dbl-buffered in+out + ~2 f32 row temps
    slack = min(1 << 20, usable // 4)
    tr_budget = max((usable - slack) // max(row_need, 1), 0)
    tr_stream = per_buf // max(row_io, 1)
    tr_max = min(tr_budget, tr_stream)
    if tr_max >= nc:
        return nc                              # full extent: always a legal block
    if tr_max >= pack:
        return (tr_max // pack) * pack
    return None


def _plan_spatial(nc, hw, itemsize, usable):
    """Row tile + lane-aligned spatial tile for the two-pass path."""
    pack = 8 * max(1, 4 // itemsize)
    tr = min(nc, pack)
    per_buf = max(usable // 8, 1)
    col_fit = per_buf // max(tr * itemsize, 1)
    thw = max(128, (col_fit // 128) * 128)
    thw = min(thw, hw)
    return tr, thw


# --------------------------------------------------------------------------
# Wrapper
# --------------------------------------------------------------------------
def conditional_instance_norm_2d(x, cond, gain_w, bias_w, *, eps=1e-5,
                                 vmem_cap_bytes=None):
    """x: (N, C, H, W), cond: (N, cond_sz), gain_w/bias_w: (C, cond_sz)
    (PyTorch nn.Linear weight layout, y = cond @ W.T)."""
    N, C, H, W = x.shape
    HW = H * W
    NC = N * C
    itemsize = jnp.dtype(x.dtype).itemsize

    # Tiny conditional affine: one (N, cond_sz) x (cond_sz, C) matmul in the
    # wrapper (f32); streamed to the kernel as per-row scale/shift operands.
    gamma = 1.0 + cond.astype(jnp.float32) @ gain_w.astype(jnp.float32).T   # (N, C)
    beta = cond.astype(jnp.float32) @ bias_w.astype(jnp.float32).T          # (N, C)
    g_rows = gamma.reshape(NC, 1)
    b_rows = beta.reshape(NC, 1)

    x_rows = x.reshape(NC, HW)     # contiguous reshape: metadata only, no HBM traffic

    usable = _usable_vmem(vmem_cap_bytes)
    tr = _plan_resident_rows(NC, HW, itemsize, usable)

    if tr is not None:
        # ---------------- resident-row path (single sweep) ----------------
        kernel = functools.partial(_cin_resident_kernel, eps=float(eps), hw=HW)
        out_rows = pl.pallas_call(
            kernel,
            out_shape=jax.ShapeDtypeStruct((NC, HW), x.dtype),
            grid=(pl.cdiv(NC, tr),),
            in_specs=[
                pl.BlockSpec((tr, HW), lambda r: (r, 0)),   # x rows (full spatial)
                pl.BlockSpec((tr, 1), lambda r: (r, 0)),    # gamma rows
                pl.BlockSpec((tr, 1), lambda r: (r, 0)),    # beta rows
            ],
            out_specs=pl.BlockSpec((tr, HW), lambda r: (r, 0)),
            compiler_params=pltpu.CompilerParams(
                dimension_semantics=("parallel",),
                vmem_limit_bytes=int(usable),
            ),
            cost_estimate=pl.CostEstimate(
                flops=7 * NC * HW,
                transcendentals=NC,
                bytes_accessed=2 * NC * HW * itemsize + 2 * NC * 4,
            ),
        )(x_rows, g_rows, b_rows)
        return out_rows.reshape(N, C, H, W)

    # ---------------- spatially tiled two-pass path ----------------
    tr, thw = _plan_spatial(NC, HW, itemsize, usable)
    r_tiles = pl.cdiv(NC, tr)
    h_tiles = pl.cdiv(HW, thw)

    stats_kernel = functools.partial(_cin_stats_kernel, eps=float(eps),
                                     hw=HW, thw=thw)
    a_rows, c_rows = pl.pallas_call(
        stats_kernel,
        out_shape=(jax.ShapeDtypeStruct((NC, 1), jnp.float32),
                   jax.ShapeDtypeStruct((NC, 1), jnp.float32)),
        grid=(r_tiles, h_tiles),
        in_specs=[
            pl.BlockSpec((tr, thw), lambda r, h: (r, h)),
            pl.BlockSpec((tr, 1), lambda r, h: (r, 0)),
            pl.BlockSpec((tr, 1), lambda r, h: (r, 0)),
        ],
        out_specs=(pl.BlockSpec((tr, 1), lambda r, h: (r, 0)),
                   pl.BlockSpec((tr, 1), lambda r, h: (r, 0))),
        scratch_shapes=[pltpu.VMEM((tr, 1), jnp.float32),
                        pltpu.VMEM((tr, 1), jnp.float32)],
        compiler_params=pltpu.CompilerParams(
            dimension_semantics=("parallel", "arbitrary"),
            vmem_limit_bytes=int(usable),
        ),
        cost_estimate=pl.CostEstimate(
            flops=3 * NC * HW,
            transcendentals=NC,
            bytes_accessed=NC * HW * itemsize + 4 * NC * 4,
        ),
    )(x_rows, g_rows, b_rows)

    out_rows = pl.pallas_call(
        _cin_apply_kernel,
        out_shape=jax.ShapeDtypeStruct((NC, HW), x.dtype),
        grid=(r_tiles, h_tiles),
        in_specs=[
            pl.BlockSpec((tr, thw), lambda r, h: (r, h)),
            pl.BlockSpec((tr, 1), lambda r, h: (r, 0)),
            pl.BlockSpec((tr, 1), lambda r, h: (r, 0)),
        ],
        out_specs=pl.BlockSpec((tr, thw), lambda r, h: (r, h)),
        compiler_params=pltpu.CompilerParams(
            dimension_semantics=("parallel", "parallel"),
            vmem_limit_bytes=int(usable),
        ),
        cost_estimate=pl.CostEstimate(
            flops=2 * NC * HW,
            transcendentals=0,
            bytes_accessed=2 * NC * HW * itemsize + 2 * NC * 4,
        ),
    )(x_rows, a_rows, c_rows)
    return out_rows.reshape(N, C, H, W)


# --------------------------------------------------------------------------
# Reference + tests
# --------------------------------------------------------------------------
def _reference(x, cond, gain_w, bias_w, eps=1e-5):
    """Pure-JAX reference mirroring the PyTorch forward."""
    xf = x.astype(jnp.float32)
    mean = xf.mean(axis=(2, 3), keepdims=True)
    var = ((xf - mean) ** 2).mean(axis=(2, 3), keepdims=True)   # biased
    normed = (xf - mean) / jnp.sqrt(var + eps)
    gamma = 1.0 + cond.astype(jnp.float32) @ gain_w.astype(jnp.float32).T
    beta = cond.astype(jnp.float32) @ bias_w.astype(jnp.float32).T
    return (gamma[:, :, None, None] * normed + beta[:, :, None, None]).astype(x.dtype)


def _run_case(key, N, C, H, W, cond_sz, **kw):
    kx, kc, kg, kb = jax.random.split(key, 4)
    x = jax.random.normal(kx, (N, C, H, W), dtype=jnp.float32)
    cond = jax.random.normal(kc, (N, cond_sz), dtype=jnp.float32)
    # Module default init is zeros (gamma==1, beta==0); use small random
    # weights to exercise the conditional path.
    gain_w = 0.1 * jax.random.normal(kg, (C, cond_sz), dtype=jnp.float32)
    bias_w = 0.1 * jax.random.normal(kb, (C, cond_sz), dtype=jnp.float32)

    out = conditional_instance_norm_2d(x, cond, gain_w, bias_w, **kw)
    out = jax.block_until_ready(out)

    ref = _reference(x, cond, gain_w, bias_w)
    assert out.shape == (N, C, H, W)
    err = jnp.max(jnp.abs(out.astype(jnp.float32) - ref.astype(jnp.float32)))
    assert jnp.allclose(out, ref, atol=2e-4, rtol=2e-4), f"max abs err = {err}"


if __name__ == "__main__":
    key = jax.random.PRNGKey(0)
    k0, k1, k2 = jax.random.split(key, 3)

    # Resident-row path, lane-aligned spatial size.
    _run_case(k0, N=2, C=4, H=16, W=16, cond_sz=8)
    # Resident-row path, odd spatial size (no wrapper pad: full-extent HW block).
    _run_case(k1, N=2, C=16, H=7, W=7, cond_sz=5)
    # Spatially tiled two-pass path (forced by a small VMEM cap): exercises
    # ragged row/spatial edge blocks and the in-kernel iota mask.
    _run_case(k2, N=2, C=10, H=64, W=64, cond_sz=6, vmem_cap_bytes=1 << 20)

    print("KERNEL_OK")
</pallas_src>

<mosaic_0001>
module attributes {stable_mosaic.version = 11 : i64} {
  func.func @_cin_resident_kernel(%arg0: i32, %arg1: memref<8x256xf32, #tpu.memory_space<vmem>>, %arg2: memref<8x1xf32, #tpu.memory_space<vmem>>, %arg3: memref<8x1xf32, #tpu.memory_space<vmem>>, %arg4: memref<8x256xf32, #tpu.memory_space<vmem>>) attributes {dimension_semantics = [#tpu.dimension_semantics<parallel>], iteration_bounds = array<i64: 1>, scalar_prefetch = 0 : i64, scratch_operands = 0 : i64, tpu.core_type = #tpu.core_type<tc>, window_params = [{transform_indices = @transform_0, window_bounds = array<i64: 8, 256>}, {transform_indices = @transform_1, window_bounds = array<i64: 8, 1>}, {transform_indices = @transform_2, window_bounds = array<i64: 8, 1>}, {transform_indices = @transform_3, window_bounds = array<i64: 8, 256>}]} {
    %c0 = arith.constant 0 : index
    %c0_0 = arith.constant 0 : index
    %0 = vector.load %arg1[%c0, %c0_0] : memref<8x256xf32, #tpu.memory_space<vmem>>, vector<8x256xf32>
    %cst = arith.constant dense<0.000000e+00> : vector<8xf32>
    %1 = vector.multi_reduction <add>, %0, %cst [1] : vector<8x256xf32> to vector<8xf32>
    %2 = vector.shape_cast %1 : vector<8xf32> to vector<8x1xf32>
    %cst_1 = arith.constant 3.906250e-03 : f32
    %3 = vector.broadcast %cst_1 : f32 to vector<8x1xf32>
    %4 = arith.mulf %2, %3 : vector<8x1xf32>
    %5 = vector.broadcast %4 : vector<8x1xf32> to vector<8x256xf32>
    %6 = arith.subf %0, %5 : vector<8x256xf32>
    %7 = arith.mulf %6, %6 : vector<8x256xf32>
    %cst_2 = arith.constant dense<0.000000e+00> : vector<8xf32>
    %8 = vector.multi_reduction <add>, %7, %cst_2 [1] : vector<8x256xf32> to vector<8xf32>
    %9 = vector.shape_cast %8 : vector<8xf32> to vector<8x1xf32>
    %cst_3 = arith.constant 3.906250e-03 : f32
    %10 = vector.broadcast %cst_3 : f32 to vector<8x1xf32>
    %11 = arith.mulf %9, %10 : vector<8x1xf32>
    %c0_4 = arith.constant 0 : index
    %c0_5 = arith.constant 0 : index
    %12 = vector.load %arg2[%c0_4, %c0_5] : memref<8x1xf32, #tpu.memory_space<vmem>>, vector<8x1xf32>
    %cst_6 = arith.constant 9.99999974E-6 : f32
    %13 = vector.broadcast %cst_6 : f32 to vector<8x1xf32>
    %14 = arith.addf %11, %13 : vector<8x1xf32>
    %15 = math.rsqrt %14 : vector<8x1xf32>
    %16 = arith.mulf %12, %15 : vector<8x1xf32>
    %17 = vector.broadcast %16 : vector<8x1xf32> to vector<8x256xf32>
    %18 = arith.mulf %6, %17 : vector<8x256xf32>
    %c0_7 = arith.constant 0 : index
    %c0_8 = arith.constant 0 : index
    %19 = vector.load %arg3[%c0_7, %c0_8] : memref<8x1xf32, #tpu.memory_space<vmem>>, vector<8x1xf32>
    %20 = vector.broadcast %19 : vector<8x1xf32> to vector<8x256xf32>
    %21 = arith.addf %18, %20 : vector<8x256xf32>
    %c0_9 = arith.constant 0 : index
    %c0_10 = arith.constant 0 : index
    %22 = vector.load %arg4[%c0_9, %c0_10] : memref<8x256xf32, #tpu.memory_space<vmem>>, vector<8x256xf32>
    tpu.vector_store %arg4[%c0_9, %c0_10], %21 {strides = array<i32>} : memref<8x256xf32, #tpu.memory_space<vmem>>, vector<8x256xf32>,
    return
  }
  func.func @transform_0(%arg0: i32) -> (i32, i32) {
    %c0_i32 = arith.constant 0 : i32
    %c0_i32_0 = arith.constant 0 : i32
    return %arg0, %c0_i32 : i32, i32
  }
  func.func @transform_1(%arg0: i32) -> (i32, i32) {
    %c0_i32 = arith.constant 0 : i32
    %c0_i32_0 = arith.constant 0 : i32
    return %arg0, %c0_i32 : i32, i32
  }
  func.func @transform_2(%arg0: i32) -> (i32, i32) {
    %c0_i32 = arith.constant 0 : i32
    %c0_i32_0 = arith.constant 0 : i32
    return %arg0, %c0_i32 : i32, i32
  }
  func.func @transform_3(%arg0: i32) -> (i32, i32) {
    %c0_i32 = arith.constant 0 : i32
    %c0_i32_0 = arith.constant 0 : i32
    return %arg0, %c0_i32 : i32, i32
  }
}

</mosaic_0001>

<llo_original>
// kernel: tpu_custom_call.1
$region0: #{tpu_custom_call.1}
  #allocation0 [shape = 'u32[]', space=smem, size = 0x4, offset = 0x4, fixed_abs, tag = 'smem constant byte address 0x4 - core index']
  #allocation1 [shape = 'u32[72,128]{1,0:T(1,128)}', space=vmem, size = 0x9000, scoped, tag = 'internal scratch']
  %s0 = inlined_call_operand.vmem [shape: f32[8,256], index: 0, kind: input, shape index: {}]
  %s1 = inlined_call_operand.vmem [shape: f32[8,1], index: 1, kind: input, shape index: {}]
  %s2 = inlined_call_operand.vmem [shape: f32[8,1], index: 2, kind: input, shape index: {}]
  %s3 = inlined_call_operand.hbm [shape: f32[8,256], index: 3, kind: output, shape index: {}]
  %s4 = sld [smem:[#allocation0]]
  $region22: #{tpu_custom_call.1} parent=0
    _
  %s6 = ssub.s32 1, %s4
  %s7 = scalar_select 0, %s6, %s4
  $region1: #{tpu_custom_call.1} parent=0
    #allocation2 [shape = 'u8[8192]{0}', space=vmem, size = 0x2000, scoped, tag = 'output window, operand 0, single buffered']
    #allocation3 [shape = 's32[1]{0}', space=sflag, size = 0x4, scoped, tag = 'scoped memory for tpu_custom_call.1']
    %8 = vsyncpa [#allocation3], 0
    // Predicated region
    $region2: #{tpu_custom_call.1} parent=1 // pred_check
      _
    $region3: #{tpu_custom_call.1} parent=1 // pred_check_branch
      %10 = sbr.rel (0) target = $region5
    $region4: #{tpu_custom_call.1} parent=1 // pred_region
      _
    $region5: #{tpu_custom_call.1} parent=1 // pred_fallthru
      _
    // Predicated region
    $region6: #{tpu_custom_call.1} parent=1 // pred_check
      _
    $region7: #{tpu_custom_call.1} parent=1 // pred_check_branch
      %12 = sbr.rel (0) target = $region9
    $region8: #{tpu_custom_call.1} parent=1 // pred_region
      _
    $region9: #{tpu_custom_call.1} parent=1 // pred_fallthru
      _
    // Predicated region
    $region10: #{tpu_custom_call.1} parent=1 // pred_check
      _
    $region11: #{tpu_custom_call.1} parent=1 // pred_check_branch
      %14 = sbr.rel (0) target = $region13
    $region12: #{tpu_custom_call.1} parent=1 // pred_region
      _
    $region13: #{tpu_custom_call.1} parent=1 // pred_fallthru
      _
    %v15 = vld [vmem:[%s0] sm:$0xff]
    %v16 = vld [vmem:[%s0 + $0x8] sm:$0xff]
    %v17 = vadd.f32 %v15, %v16
    %18 = vadd.xlane.f32.xlu0 %v17
    %v19 = vpop.xlane.xlu0 %18
    %v20 = vmul.f32 %v19, 0.00390625
    %v21 = vsub.f32 %v15, %v20
    %v22 = vsub.f32 %v16, %v20
    %v23 = vmul.f32 %v21, %v21
    %v24 = vmul.f32 %v22, %v22
    %v25 = vadd.f32 %v23, %v24
    %26 = vadd.xlane.f32.xlu0 %v25
    %v27 = vpop.xlane.xlu0 %26
    %v28 = vmul.f32 %v27, 0.00390625
    %v29 = vld [vmem:[%s1] sm:$0xff]
    %v30 = vadd.f32 %v28, 1e-05
    %v31 = vrsqrt.pop %v30
    %v32 = vmul.f32 %v31, %v30
    %v33 = vmul.f32 %v32, %v31
    %v34 = vmul.f32 0.5, %v33
    %v35 = vsub.f32 1.5, %v34
    %v36 = vmul.f32 %v31, %v35
    %vm37 = vweird.f32 %v30
    %vm38 = vweird.f32 %v31
    %vm39 = vmor %vm37, %vm38
    %v40 = vsel %vm39, %v31, %v36
    %v41 = vmul.f32 %v29, %v40
    %43 = vset.pattern.permute.xlu0 0
    %44 = vperm.xlu0 %43, %v41
    %v45 = vpop.permute.xlu0 %44
    %v47 = vmul.f32 %v21, %v45
    %v48 = vmul.f32 %v22, %v45
    %v49 = vld [vmem:[%s2] sm:$0xff]
    %51 = vset.pattern.permute.xlu0 0
    %52 = vperm.xlu0 %51, %v49
    %v53 = vpop.permute.xlu0 %52
    %v55 = vadd.f32 %v47, %v53
    %v56 = vadd.f32 %v48, %v53
    %57 = vst [vmem:[#allocation2] sm:$0xff] %v55
    %58 = vst [vmem:[#allocation2 + $0x8] sm:$0xff] %v56
    // Predicated region
    $region14: #{tpu_custom_call.1} parent=1 // pred_check
      _
    $region15: #{tpu_custom_call.1} parent=1 // pred_check_branch
      %60 = sbr.rel (0) target = $region17
    $region16: #{tpu_custom_call.1} parent=1 // pred_region
      %62 = vsyncadd [#allocation3], 0
      %s64 = sshll.u32 [#allocation2], 4
      %s65 = int_to_ptr.vmem [resolvable:$true] %s64
      %s66 = sshll.u32 %s3, 4
      %s67 = int_to_ptr.hbm [resolvable:$true] %s66
      %69 = dma.vmem_to_hbm [thread:$0]  %s65, 256, %s67, [#allocation3]
    $region17: #{tpu_custom_call.1} parent=1 // pred_fallthru
      _
    // Predicated region
    $region18: #{tpu_custom_call.1} parent=1 // pred_check
      _
    $region19: #{tpu_custom_call.1} parent=1 // pred_check_branch
      %71 = sbr.rel (0) target = $region21
    $region20: #{tpu_custom_call.1} parent=1 // pred_region
      %73 = dma.done [#allocation3], 256
    $region21: #{tpu_custom_call.1} parent=1 // pred_fallthru
      _
    %74 = vsyncpa [#allocation3], 1

</llo_original>
